<compile_context>
chip_gen: v5e
topology: v5e:2x2
jax: 0.10.0
libtpu: 0.0.40
codegen_flags: <defaults>
</compile_context>

<pallas_src>
import functools

import jax
import jax.numpy as jnp
from jax import lax
from jax.experimental import pallas as pl
from jax.experimental.pallas import tpu as pltpu


_LANE_TILES = (4096, 2048, 1024, 512, 256, 128)     # lane dim: multiples of 128
_ROW_TILES = (1024, 512, 256, 128, 64, 32, 16, 8)   # sublane dim: multiples of 8


def _pick_tile(total, candidates):
    for c in candidates:
        if total >= c and total % c == 0:
            return c
    return total                                    # block == full dim is always legal


def _vmem_capacity_bytes():
    try:
        return int(pltpu.get_tpu_info().vmem_capacity_bytes)
    except Exception:
        return 64 << 20                             # assume the smallest (v7x-sized) VMEM


def _vmem_budget_bytes():
    # ~60% of physical VMEM: headroom for Mosaic internal scratch on v7x (64 MiB/TC),
    # while naturally allowing bigger tiles on v5e/v6e (128 MiB).
    return max(16 << 20, int(0.6 * _vmem_capacity_bytes()))


def _pooling_matrix(H, W, n_levels, dtype=jnp.float32):
    """(H*W, F) matrix P such that x_flat @ P == concat of adaptive avg pools
    (exact when H, W are multiples of 2**(n_levels-1))."""
    cols = []
    for i in range(n_levels):
        s = 2 ** i
        bh = jnp.arange(H) // (H // s)
        bw = jnp.arange(W) // (W // s)
        idx = (bh[:, None] * s + bw[None, :]).reshape(H * W)          # block id per pixel
        onehot = (idx[:, None] == jnp.arange(s * s)[None, :]).astype(dtype)
        cols.append(onehot / ((H // s) * (W // s)))
    return jnp.concatenate(cols, axis=1)                              # (H*W, F)


# --------------------------- fused kernel (preferred path) ---------------------------

def _fused_kernel(x_ref, p_ref, wdk_ref, bdflat_ref, m_ref, w1t_ref, w2t_ref, b2_ref, o_ref):
    # x_ref: (C, H*W) slab for one batch element (leading grid dim squeezed).
    x_blk = x_ref[...].astype(jnp.float32)
    C = x_blk.shape[0]

    # 1) pooled pyramid on the MXU: (C, HW) @ (HW, F) -> (C, F)
    pyr = jnp.dot(x_blk, p_ref[...], preferred_element_type=jnp.float32)

    # 2) 1x1-conv descriptor, emitted directly in the flattened (1, C*D) layout
    #    (no in-kernel reshape): dexp[c, c'*D+d] = delta(c,c') * <pyr[c,:], Wdes[d,:]>
    dexp = jnp.dot(pyr, wdk_ref[...], preferred_element_type=jnp.float32) * m_ref[...]
    flat = jnp.sum(dexp, axis=0, keepdims=True) + bdflat_ref[...]          # (1, C*D)

    # 3) channel-gate MLP (a few kFLOPs; lives entirely in vregs)
    h = jnp.maximum(jnp.dot(flat, w1t_ref[...], preferred_element_type=jnp.float32), 0.0)
    z = jnp.dot(h, w2t_ref[...], preferred_element_type=jnp.float32) + b2_ref[...]
    gate = 1.0 / (1.0 + jnp.exp(-z))                                       # (1, C) on lanes

    # 4) move the gate from lanes to sublanes without a transpose:
    #    eye-mask the sublane broadcast and reduce over lanes -> (C, 1)
    ri = lax.broadcasted_iota(jnp.int32, (C, C), 0)
    ci = lax.broadcasted_iota(jnp.int32, (C, C), 1)
    eye = (ri == ci).astype(jnp.float32)
    gate_col = jnp.sum(eye * gate, axis=1, keepdims=True)                  # (C, 1)

    # 5) gate * x, written back once (x only read once from HBM)
    o_ref[...] = (gate_col * x_blk).astype(o_ref.dtype)


def _pdl_fused(x3, p_mat, wdk, bd_flat, m_mask, w1t, w2t, b2, budget):
    B, C, HW = x3.shape
    F = p_mat.shape[1]
    CD = wdk.shape[1]
    mid = w1t.shape[1]
    const2 = lambda b: (0, 0)

    return pl.pallas_call(
        _fused_kernel,
        out_shape=jax.ShapeDtypeStruct((B, C, HW), x3.dtype),
        grid=(B,),
        in_specs=[
            pl.BlockSpec((None, C, HW), lambda b: (b, 0, 0)),   # one batch slab per step
            pl.BlockSpec((HW, F), const2),                      # pooling matrix, VMEM-resident
            pl.BlockSpec((F, CD), const2),                      # C-tiled 1x1-conv weight
            pl.BlockSpec((1, CD), const2),                      # C-tiled conv bias
            pl.BlockSpec((C, CD), const2),                      # block-diagonal mask
            pl.BlockSpec((CD, mid), const2),                    # mlp W1^T
            pl.BlockSpec((mid, C), const2),                     # mlp W2^T
            pl.BlockSpec((1, C), const2),                       # mlp b2
        ],
        out_specs=pl.BlockSpec((None, C, HW), lambda b: (b, 0, 0)),
        compiler_params=pltpu.CompilerParams(
            dimension_semantics=("parallel",),                  # megacore over batch on v7x
            vmem_limit_bytes=budget),
    )(x3, p_mat, wdk, bd_flat, m_mask, w1t, w2t, b2)


# --------------------------- split kernels (large-slab fallback) ---------------------------

def _descriptor_kernel(p_resident, tk, x_ref, p_ref, wd_ref, bd_ref, y_ref, acc_ref):
    k = pl.program_id(1)

    @pl.when(k == 0)
    def _():
        acc_ref[...] = jnp.zeros_like(acc_ref)

    if p_resident:
        p_blk = p_ref[pl.ds(pl.multiple_of(k * tk, tk), tk), :]   # slice resident P
    else:
        p_blk = p_ref[...]                                        # streamed (tk, F) block
    acc_ref[...] += jnp.dot(x_ref[...], p_blk, preferred_element_type=jnp.float32)

    @pl.when(k == pl.num_programs(1) - 1)
    def _():
        y_ref[...] = (
            jnp.dot(acc_ref[...], wd_ref[...], preferred_element_type=jnp.float32)
            + bd_ref[...]
        ).astype(y_ref.dtype)


def _scale_kernel(g_ref, x_ref, o_ref):
    # per-row scalar (TR,1) broadcast over the lane dim
    o_ref[...] = g_ref[...] * x_ref[...]


def _pdl_split(x2, p_mat, wd_t, bd_row, w1, w2, b2, B, C, budget):
    rows, cols = x2.shape
    F, D = wd_t.shape

    # ---- K1: pooled-pyramid descriptor  y = (x2 @ P) @ WdT + bd  -> (B*C, D) ----
    tk = _pick_tile(cols, _LANE_TILES)
    tile_cap = max(2 << 20, budget // 8)        # ~4-5 MiB on v7x, ~9-10 MiB on v5e/v6e
    row_cands = tuple(r for r in _ROW_TILES if r * tk * 4 <= tile_cap) or (8,)
    tr = _pick_tile(rows, row_cands)
    p_resident = cols * F * 4 <= max(4 << 20, budget // 3)
    if p_resident:
        p_spec = pl.BlockSpec((cols, F), lambda i, k: (0, 0))     # DMA'd once, stays resident
    else:
        p_spec = pl.BlockSpec((tk, F), lambda i, k: (k, 0))       # streamed per contraction step

    y = pl.pallas_call(
        functools.partial(_descriptor_kernel, p_resident, tk),
        out_shape=jax.ShapeDtypeStruct((rows, D), jnp.float32),
        grid=(rows // tr, cols // tk),
        in_specs=[
            pl.BlockSpec((tr, tk), lambda i, k: (i, k)),
            p_spec,
            pl.BlockSpec((F, D), lambda i, k: (0, 0)),
            pl.BlockSpec((1, D), lambda i, k: (0, 0)),
        ],
        out_specs=pl.BlockSpec((tr, D), lambda i, k: (i, 0)),
        scratch_shapes=[pltpu.VMEM((tr, F), jnp.float32)],
        compiler_params=pltpu.CompilerParams(
            dimension_semantics=("parallel", "arbitrary"),
            vmem_limit_bytes=budget),
    )(x2, p_mat, wd_t, bd_row)

    # ---- gate MLP: tiny, plain XLA (a dedicated pallas_call costs more in dispatch) ----
    y_b = y.reshape(B, C * D)
    h = jnp.maximum(y_b @ w1.T, 0.0)
    gate = jax.nn.sigmoid(h @ w2.T + b2)                          # (B, C)

    # ---- K3: HBM-bound scaling pass  out[bc, :] = gate[bc] * x[bc, :] ----
    gate_col = gate.reshape(rows, 1).astype(x2.dtype)             # free reshape, no tiling
    tl = _pick_tile(cols, _LANE_TILES)
    row_cands3 = tuple(r for r in _ROW_TILES if r * tl * 4 <= tile_cap) or (8,)
    tr3 = _pick_tile(rows, row_cands3)

    return pl.pallas_call(
        _scale_kernel,
        out_shape=jax.ShapeDtypeStruct((rows, cols), x2.dtype),
        grid=(rows // tr3, cols // tl),
        in_specs=[
            pl.BlockSpec((tr3, 1), lambda i, j: (i, 0)),
            pl.BlockSpec((tr3, tl), lambda i, j: (i, j)),
        ],
        out_specs=pl.BlockSpec((tr3, tl), lambda i, j: (i, j)),
        compiler_params=pltpu.CompilerParams(
            dimension_semantics=("parallel", "parallel"),
            vmem_limit_bytes=budget),
    )(gate_col, x2)


# --------------------------- wrapper ---------------------------

def pdl_block(x, des_w, des_b, mlp_w1, mlp_w2, mlp_b2, *, pp_layer=4, force_split=False):
    """Pallas forward of PDL_Block.

    x:      (B, C, H, W) f32
    des_w:  (D, F, 1, 1), F = (4**pp_layer - 1) // 3
    des_b:  (D,)
    mlp_w1: (mid, C*D)   (PyTorch Linear weight, no bias)
    mlp_w2: (C, mid)
    mlp_b2: (C,)
    """
    B, C, H, W = x.shape
    D, F = des_w.shape[0], des_w.shape[1]
    mid = mlp_w1.shape[0]
    s_max = 2 ** (pp_layer - 1)
    assert F == (4 ** pp_layer - 1) // 3
    assert H % s_max == 0 and W % s_max == 0, (
        "adaptive_avg_pool2d windows are uniform only when H, W are multiples of "
        "2**(pp_layer-1)")
    # TODO(synk): non-divisible H/W would need PyTorch's floor/ceil adaptive-pool windows.

    HW = H * W
    budget = _vmem_budget_bytes()
    p_mat = _pooling_matrix(H, W, pp_layer, jnp.float32)          # (HW, F) constant
    wd_t = des_w[:, :, 0, 0].T.astype(jnp.float32)                # (F, D)

    # Fused path requires: double-buffered (C, HW) slab in + out, plus resident weights
    # (the pooling matrix dominates).
    slab_bytes = C * HW * 4
    weight_bytes = 4 * (HW * F + F * C * D + C * C * D + C * D * mid + mid * C + 3 * C * D)
    use_fused = (not force_split) and (4 * slab_bytes + weight_bytes + (8 << 20) <= budget)

    if use_fused:
        x3 = x.reshape(B, C, HW)
        wdk = jnp.tile(wd_t, (1, C))                                         # (F, C*D)
        bd_flat = jnp.tile(des_b.reshape(1, D).astype(jnp.float32), (1, C))  # (1, C*D)
        m_mask = jnp.repeat(jnp.eye(C, dtype=jnp.float32), D, axis=1)        # (C, C*D)
        w1t = mlp_w1.T.astype(jnp.float32)                                   # (C*D, mid)
        w2t = mlp_w2.T.astype(jnp.float32)                                   # (mid, C)
        b2 = mlp_b2.reshape(1, C).astype(jnp.float32)
        out3 = _pdl_fused(x3, p_mat, wdk, bd_flat, m_mask, w1t, w2t, b2, budget)
        return out3.reshape(B, C, H, W)

    x2 = x.reshape(B * C, HW)
    out2 = _pdl_split(x2, p_mat, wd_t, des_b.reshape(1, D).astype(jnp.float32),
                      mlp_w1.astype(jnp.float32), mlp_w2.astype(jnp.float32),
                      mlp_b2.astype(jnp.float32), B, C, budget)
    return out2.reshape(B, C, H, W)


if __name__ == "__main__":
    B, C, H, W = 2, 4, 16, 16
    pp_layer, descriptor, mid_feats = 4, 8, 16
    F = (4 ** pp_layer - 1) // 3          # 85

    key = jax.random.PRNGKey(0)
    kx, k1, k2, k3, k4, k5 = jax.random.split(key, 6)

    x = jax.random.normal(kx, (B, C, H, W), dtype=jnp.float32)
    des_w = 0.1 * jax.random.normal(k1, (descriptor, F, 1, 1), dtype=jnp.float32)
    des_b = 0.1 * jax.random.normal(k2, (descriptor,), dtype=jnp.float32)
    mlp_w1 = 0.1 * jax.random.normal(k3, (mid_feats, descriptor * C), dtype=jnp.float32)
    mlp_w2 = 0.1 * jax.random.normal(k4, (C, mid_feats), dtype=jnp.float32)
    mlp_b2 = 0.1 * jax.random.normal(k5, (C,), dtype=jnp.float32)

    # Pure-JAX reference mirroring the PyTorch forward.
    def reference(x):
        pools = []
        for i in range(pp_layer):
            s = 2 ** i
            p = x.reshape(B, C, s, H // s, s, W // s).mean(axis=(3, 5))   # (B,C,s,s)
            pools.append(p.reshape(B, C, s * s))
        pyr = jnp.concatenate(pools, axis=-1)                             # (B,C,F)
        y = jnp.einsum("bcf,df->bcd", pyr, des_w[:, :, 0, 0]) + des_b     # (B,C,D)
        y = y.reshape(B, C * descriptor)
        h = jnp.maximum(y @ mlp_w1.T, 0.0)
        g = jax.nn.sigmoid(h @ mlp_w2.T + mlp_b2)                         # (B,C)
        return g[:, :, None, None] * x

    ref = reference(x)

    # Fused single-kernel path (default).
    out_fused = jax.block_until_ready(
        pdl_block(x, des_w, des_b, mlp_w1, mlp_w2, mlp_b2, pp_layer=pp_layer))
    assert out_fused.shape == (B, C, H, W)
    assert jnp.allclose(out_fused, ref, atol=2e-3, rtol=2e-3), \
        float(jnp.max(jnp.abs(out_fused - ref)))

    # Also exercise the large-slab fallback (split kernels) so both paths are validated.
    out_split = jax.block_until_ready(
        pdl_block(x, des_w, des_b, mlp_w1, mlp_w2, mlp_b2, pp_layer=pp_layer,
                  force_split=True))
    assert jnp.allclose(out_split, ref, atol=2e-3, rtol=2e-3), \
        float(jnp.max(jnp.abs(out_split - ref)))

    print("KERNEL_OK")
</pallas_src>

<mosaic_0001>
module attributes {stable_mosaic.version = 11 : i64} {
  func.func @_fused_kernel(%arg0: i32, %arg1: memref<1x4x256xf32, #tpu.memory_space<vmem>>, %arg2: memref<256x85xf32, #tpu.memory_space<vmem>>, %arg3: memref<85x32xf32, #tpu.memory_space<vmem>>, %arg4: memref<1x32xf32, #tpu.memory_space<vmem>>, %arg5: memref<4x32xf32, #tpu.memory_space<vmem>>, %arg6: memref<32x16xf32, #tpu.memory_space<vmem>>, %arg7: memref<16x4xf32, #tpu.memory_space<vmem>>, %arg8: memref<1x4xf32, #tpu.memory_space<vmem>>, %arg9: memref<1x4x256xf32, #tpu.memory_space<vmem>>) attributes {dimension_semantics = [#tpu.dimension_semantics<parallel>], iteration_bounds = array<i64: 2>, scalar_prefetch = 0 : i64, scratch_operands = 0 : i64, tpu.core_type = #tpu.core_type<tc>, window_params = [{transform_indices = @transform_0, window_bounds = array<i64: 1, 4, 256>}, {pipeline_mode = #tpu.pipeline_mode<synchronous>, transform_indices = @transform_1, window_bounds = array<i64: 256, 85>}, {pipeline_mode = #tpu.pipeline_mode<synchronous>, transform_indices = @transform_2, window_bounds = array<i64: 85, 32>}, {pipeline_mode = #tpu.pipeline_mode<synchronous>, transform_indices = @transform_3, window_bounds = array<i64: 1, 32>}, {pipeline_mode = #tpu.pipeline_mode<synchronous>, transform_indices = @transform_4, window_bounds = array<i64: 4, 32>}, {pipeline_mode = #tpu.pipeline_mode<synchronous>, transform_indices = @transform_5, window_bounds = array<i64: 32, 16>}, {pipeline_mode = #tpu.pipeline_mode<synchronous>, transform_indices = @transform_6, window_bounds = array<i64: 16, 4>}, {pipeline_mode = #tpu.pipeline_mode<synchronous>, transform_indices = @transform_7, window_bounds = array<i64: 1, 4>}, {transform_indices = @transform_8, window_bounds = array<i64: 1, 4, 256>}]} {
    %c0 = arith.constant 0 : index
    %c0_0 = arith.constant 0 : index
    %c0_1 = arith.constant 0 : index
    %0 = vector.load %arg1[%c0, %c0_0, %c0_1] : memref<1x4x256xf32, #tpu.memory_space<vmem>>, vector<1x4x256xf32>
    %1 = vector.shape_cast %0 : vector<1x4x256xf32> to vector<4x256xf32>
    %c0_2 = arith.constant 0 : index
    %c0_3 = arith.constant 0 : index
    %2 = vector.load %arg2[%c0_2, %c0_3] : memref<256x85xf32, #tpu.memory_space<vmem>>, vector<256x85xf32>
    %cst = arith.constant dense<0.000000e+00> : vector<4x85xf32>
    %3 = tpu.matmul %1, %2, %cst {dimension_numbers = #tpu.dot_dimension_numbers<[1], [0], [0], [1], [0, 0, 1, 1], [], []>} : vector<4x256xf32>, vector<256x85xf32>, vector<4x85xf32> -> vector<4x85xf32>
    %c0_4 = arith.constant 0 : index
    %c0_5 = arith.constant 0 : index
    %4 = vector.load %arg3[%c0_4, %c0_5] : memref<85x32xf32, #tpu.memory_space<vmem>>, vector<85x32xf32>
    %cst_6 = arith.constant dense<0.000000e+00> : vector<4x32xf32>
    %5 = tpu.matmul %3, %4, %cst_6 {dimension_numbers = #tpu.dot_dimension_numbers<[1], [0], [0], [1], [0, 0, 1, 1], [], []>} : vector<4x85xf32>, vector<85x32xf32>, vector<4x32xf32> -> vector<4x32xf32>
    %c0_7 = arith.constant 0 : index
    %c0_8 = arith.constant 0 : index
    %6 = vector.load %arg5[%c0_7, %c0_8] : memref<4x32xf32, #tpu.memory_space<vmem>>, vector<4x32xf32>
    %7 = arith.mulf %5, %6 : vector<4x32xf32>
    %cst_9 = arith.constant dense<0.000000e+00> : vector<32xf32>
    %8 = vector.multi_reduction <add>, %7, %cst_9 [0] : vector<4x32xf32> to vector<32xf32>
    %9 = vector.shape_cast %8 : vector<32xf32> to vector<1x32xf32>
    %c0_10 = arith.constant 0 : index
    %c0_11 = arith.constant 0 : index
    %10 = vector.load %arg4[%c0_10, %c0_11] : memref<1x32xf32, #tpu.memory_space<vmem>>, vector<1x32xf32>
    %11 = arith.addf %9, %10 : vector<1x32xf32>
    %c0_12 = arith.constant 0 : index
    %c0_13 = arith.constant 0 : index
    %12 = vector.load %arg6[%c0_12, %c0_13] : memref<32x16xf32, #tpu.memory_space<vmem>>, vector<32x16xf32>
    %cst_14 = arith.constant dense<0.000000e+00> : vector<1x16xf32>
    %13 = tpu.matmul %11, %12, %cst_14 {dimension_numbers = #tpu.dot_dimension_numbers<[1], [0], [0], [1], [0, 0, 1, 1], [], []>} : vector<1x32xf32>, vector<32x16xf32>, vector<1x16xf32> -> vector<1x16xf32>
    %cst_15 = arith.constant 0.000000e+00 : f32
    %14 = vector.broadcast %cst_15 : f32 to vector<1x16xf32>
    %15 = arith.maximumf %13, %14 : vector<1x16xf32>
    %c0_16 = arith.constant 0 : index
    %c0_17 = arith.constant 0 : index
    %16 = vector.load %arg7[%c0_16, %c0_17] : memref<16x4xf32, #tpu.memory_space<vmem>>, vector<16x4xf32>
    %cst_18 = arith.constant dense<0.000000e+00> : vector<1x4xf32>
    %17 = tpu.matmul %15, %16, %cst_18 {dimension_numbers = #tpu.dot_dimension_numbers<[1], [0], [0], [1], [0, 0, 1, 1], [], []>} : vector<1x16xf32>, vector<16x4xf32>, vector<1x4xf32> -> vector<1x4xf32>
    %c0_19 = arith.constant 0 : index
    %c0_20 = arith.constant 0 : index
    %18 = vector.load %arg8[%c0_19, %c0_20] : memref<1x4xf32, #tpu.memory_space<vmem>>, vector<1x4xf32>
    %19 = arith.addf %17, %18 : vector<1x4xf32>
    %cst_21 = arith.constant 0.000000e+00 : f32
    %20 = vector.broadcast %cst_21 : f32 to vector<1x4xf32>
    %21 = arith.subf %20, %19 : vector<1x4xf32>
    %22 = math.exp %21 : vector<1x4xf32>
    %cst_22 = arith.constant 1.000000e+00 : f32
    %23 = vector.broadcast %cst_22 : f32 to vector<1x4xf32>
    %24 = arith.addf %23, %22 : vector<1x4xf32>
    %cst_23 = arith.constant 1.000000e+00 : f32
    %25 = vector.broadcast %cst_23 : f32 to vector<1x4xf32>
    %26 = arith.divf %25, %24 : vector<1x4xf32>
    %27 = tpu.iota {dimensions = array<i32: 0>} : vector<4x4xi32>
    %28 = tpu.iota {dimensions = array<i32: 1>} : vector<4x4xi32>
    %29 = arith.cmpi eq, %27, %28 : vector<4x4xi32>
    %30 = arith.extui %29 : vector<4x4xi1> to vector<4x4xi32>
    %31 = arith.sitofp %30 : vector<4x4xi32> to vector<4x4xf32>
    %32 = vector.broadcast %26 : vector<1x4xf32> to vector<4x4xf32>
    %33 = arith.mulf %31, %32 : vector<4x4xf32>
    %cst_24 = arith.constant dense<0.000000e+00> : vector<4xf32>
    %34 = vector.multi_reduction <add>, %33, %cst_24 [1] : vector<4x4xf32> to vector<4xf32>
    %35 = vector.shape_cast %34 : vector<4xf32> to vector<4x1xf32>
    %36 = vector.broadcast %35 : vector<4x1xf32> to vector<4x256xf32>
    %37 = arith.mulf %36, %1 : vector<4x256xf32>
    %c0_25 = arith.constant 0 : index
    %c0_26 = arith.constant 0 : index
    %c0_27 = arith.constant 0 : index
    %38 = vector.load %arg9[%c0_25, %c0_26, %c0_27] : memref<1x4x256xf32, #tpu.memory_space<vmem>>, vector<1x4x256xf32>
    %39 = vector.shape_cast %38 : vector<1x4x256xf32> to vector<4x256xf32>
    %40 = vector.shape_cast %37 : vector<4x256xf32> to vector<1x4x256xf32>
    tpu.vector_store %arg9[%c0_25, %c0_26, %c0_27], %40 {strides = array<i32>} : memref<1x4x256xf32, #tpu.memory_space<vmem>>, vector<1x4x256xf32>,
    return
  }
  func.func @transform_0(%arg0: i32) -> (i32, i32, i32) {
    %c0_i32 = arith.constant 0 : i32
    %c0_i32_0 = arith.constant 0 : i32
    %c0_i32_1 = arith.constant 0 : i32
    return %arg0, %c0_i32, %c0_i32_0 : i32, i32, i32
  }
  func.func @transform_1(%arg0: i32) -> (i32, i32) {
    %c0_i32 = arith.constant 0 : i32
    %c0_i32_0 = arith.constant 0 : i32
    %c0_i32_1 = arith.constant 0 : i32
    return %c0_i32, %c0_i32_0 : i32, i32
  }
  func.func @transform_2(%arg0: i32) -> (i32, i32) {
    %c0_i32 = arith.constant 0 : i32
    %c0_i32_0 = arith.constant 0 : i32
    %c0_i32_1 = arith.constant 0 : i32
    return %c0_i32, %c0_i32_0 : i32, i32
  }
  func.func @transform_3(%arg0: i32) -> (i32, i32) {
    %c0_i32 = arith.constant 0 : i32
    %c0_i32_0 = arith.constant 0 : i32
    %c0_i32_1 = arith.constant 0 : i32
    return %c0_i32, %c0_i32_0 : i32, i32
  }
  func.func @transform_4(%arg0: i32) -> (i32, i32) {
    %c0_i32 = arith.constant 0 : i32
    %c0_i32_0 = arith.constant 0 : i32
    %c0_i32_1 = arith.constant 0 : i32
    return %c0_i32, %c0_i32_0 : i32, i32
  }
  func.func @transform_5(%arg0: i32) -> (i32, i32) {
    %c0_i32 = arith.constant 0 : i32
    %c0_i32_0 = arith.constant 0 : i32
    %c0_i32_1 = arith.constant 0 : i32
    return %c0_i32, %c0_i32_0 : i32, i32
  }
  func.func @transform_6(%arg0: i32) -> (i32, i32) {
    %c0_i32 = arith.constant 0 : i32
    %c0_i32_0 = arith.constant 0 : i32
    %c0_i32_1 = arith.constant 0 : i32
    return %c0_i32, %c0_i32_0 : i32, i32
  }
  func.func @transform_7(%arg0: i32) -> (i32, i32) {
    %c0_i32 = arith.constant 0 : i32
    %c0_i32_0 = arith.constant 0 : i32
    %c0_i32_1 = arith.constant 0 : i32
    return %c0_i32, %c0_i32_0 : i32, i32
  }
  func.func @transform_8(%arg0: i32) -> (i32, i32, i32) {
    %c0_i32 = arith.constant 0 : i32
    %c0_i32_0 = arith.constant 0 : i32
    %c0_i32_1 = arith.constant 0 : i32
    return %arg0, %c0_i32, %c0_i32_0 : i32, i32, i32
  }
}

</mosaic_0001>

<llo_original>
// kernel: tpu_custom_call.1
$region0: #{tpu_custom_call.1}
  #allocation0 [shape = 'u32[]', space=smem, size = 0x4, offset = 0x4, fixed_abs, tag = 'smem constant byte address 0x4 - core index']
  #allocation1 [shape = 'u32[72,128]{1,0:T(1,128)}', space=vmem, size = 0x9000, scoped, tag = 'internal scratch']
  %s0 = inlined_call_operand.vmem [shape: f32[2,4,256], index: 0, kind: input, shape index: {}]
  %s1 = inlined_call_operand.vmem [shape: f32[256,85], index: 1, kind: input, shape index: {}]
  %s2 = inlined_call_operand.vmem [shape: f32[85,32], index: 2, kind: input, shape index: {}]
  %s3 = inlined_call_operand.vmem [shape: f32[1,32], index: 3, kind: input, shape index: {}]
  %s4 = inlined_call_operand.vmem [shape: f32[4,32], index: 4, kind: input, shape index: {}]
  %s5 = inlined_call_operand.vmem [shape: f32[32,16], index: 5, kind: input, shape index: {}]
  %s6 = inlined_call_operand.vmem [shape: f32[16,4], index: 6, kind: input, shape index: {}]
  %s7 = inlined_call_operand.vmem [shape: f32[1,4], index: 7, kind: input, shape index: {}]
  %s8 = inlined_call_operand.hbm [shape: f32[2,4,256], index: 8, kind: output, shape index: {}]
  %s9 = sld [smem:[#allocation0]]
  $region65: #{tpu_custom_call.1} parent=0
    _
  %s11 = ssub.s32 1, %s9
  %s12 = scalar_select 0, %s11, %s9
  $region1: #{tpu_custom_call.1} parent=0
    #allocation2 [shape = 'u8[8192]{0}', space=vmem, size = 0x2000, scoped, tag = 'output window, operand 0']
    #allocation3 [shape = 's32[2]{0}', space=sflag, size = 0x8, scoped, tag = 'scoped memory for tpu_custom_call.1']
    %13 = vsyncpa [#allocation3], 0
    %s14 = scalar_lea.sflag [#allocation3], 1
    %15 = vsyncpa %s14, 0
    loop: start=0, step=1, limit=4
    $region2: #{tpu_custom_call.1} parent=1 // loop_pre_header
      _
    $region3: #{tpu_custom_call.1} parent=1 // loop_header
      %s17 = sphi 0, %s21
      %p18 = scmp.ge.s32.totalorder %s17, 4
      %s27 = sphi 0, %s29
      %s30 = sphi 0, %s27
      %s31 = sphi 0, %s30
      %s47 = sphi 0, %s31
      %s51 = sphi 0, %s51
      %s53 = sphi 0, %s51
      %s54 = sphi 0, %s53
      %s68 = sphi 0, %s54
      %s72 = sphi 0, %s72
      %s74 = sphi 0, %s72
      %s75 = sphi 0, %s74
      %s89 = sphi 0, %s75
      %s93 = sphi 0, %s93
      %s95 = sphi 0, %s93
      %s96 = sphi 0, %s95
      %s110 = sphi 0, %s96
      %s114 = sphi 0, %s114
      %s116 = sphi 0, %s114
      %s117 = sphi 0, %s116
      %s131 = sphi 0, %s117
      %s135 = sphi 0, %s135
      %s137 = sphi 0, %s135
      %s138 = sphi 0, %s137
      %s152 = sphi 0, %s138
      %s156 = sphi 0, %s156
      %s158 = sphi 0, %s156
      %s159 = sphi 0, %s158
      %s173 = sphi 0, %s159
      %s177 = sphi 0, %s177
      %s179 = sphi 0, %s177
      %s180 = sphi 0, %s179
      %s194 = sphi 0, %s180
      %s200 = sphi 0, %s202
      %s203 = sphi 0, %s200
      %s204 = sphi 0, %s203
      %s220 = sphi 0, %s204
    $region4: #{tpu_custom_call.1} parent=1 // loop_header_branch
      %20 = sbr.rel (%p18) target = $region8
    $region5: #{tpu_custom_call.1} parent=1 // loop_body
      %s22 = ssub.s32 %s17, 1
      %s23 = ssub.s32 %s17, 2
      %s24 = sadd.s32 %s17, 1
      %s25 = ssub.s32 %s17, %s24
      %p26 = scmp.eq.s32.totalorder %s25, 0
      %s28 = sadd.s32 %s27, 1
      %s29 = scalar_select %p26, %s27, %s28
      %p32 = pneg %p26
      %p33 = scmp.eq.s32.totalorder %s17, 1
      %p34 = por %p32, %p33
      %p35 = scmp.ne.s32.totalorder %s27, %s30
      %p36 = scmp.eq.s32.totalorder %s17, 0
      %p37 = por %p35, %p36
      %p38 = scmp.ne.s32.totalorder %s27, %s30
      %p39 = scmp.eq.s32.totalorder %s22, 1
      %p40 = por %p38, %p39
      %p41 = scmp.ne.s32.totalorder %s30, %s31
      %p42 = scmp.eq.s32.totalorder %s22, 0
      %p43 = por %p41, %p42
      %p44 = scmp.ne.s32.totalorder %s30, %s31
      %p45 = scmp.eq.s32.totalorder %s23, 1
      %p46 = por %p44, %p45
      %p48 = scmp.ne.s32.totalorder %s31, %s47
      %p49 = scmp.eq.s32.totalorder %s23, 0
      %p50 = por %p48, %p49
      %s52 = sadd.s32 %s51, 1
      %p55 = scmp.eq.s32.totalorder %s17, 1
      %p56 = scmp.ne.s32.totalorder %s51, %s53
      %p57 = scmp.eq.s32.totalorder %s17, 0
      %p58 = por %p56, %p57
      %p59 = scmp.ne.s32.totalorder %s51, %s53
      %p60 = scmp.eq.s32.totalorder %s22, 1
      %p61 = por %p59, %p60
      %p62 = scmp.ne.s32.totalorder %s53, %s54
      %p63 = scmp.eq.s32.totalorder %s22, 0
      %p64 = por %p62, %p63
      %p65 = scmp.ne.s32.totalorder %s53, %s54
      %p66 = scmp.eq.s32.totalorder %s23, 1
      %p67 = por %p65, %p66
      %p69 = scmp.ne.s32.totalorder %s54, %s68
      %p70 = scmp.eq.s32.totalorder %s23, 0
      %p71 = por %p69, %p70
      %s73 = sadd.s32 %s72, 1
      %p76 = scmp.eq.s32.totalorder %s17, 1
      %p77 = scmp.ne.s32.totalorder %s72, %s74
      %p78 = scmp.eq.s32.totalorder %s17, 0
      %p79 = por %p77, %p78
      %p80 = scmp.ne.s32.totalorder %s72, %s74
      %p81 = scmp.eq.s32.totalorder %s22, 1
      %p82 = por %p80, %p81
      %p83 = scmp.ne.s32.totalorder %s74, %s75
      %p84 = scmp.eq.s32.totalorder %s22, 0
      %p85 = por %p83, %p84
      %p86 = scmp.ne.s32.totalorder %s74, %s75
      %p87 = scmp.eq.s32.totalorder %s23, 1
      %p88 = por %p86, %p87
      %p90 = scmp.ne.s32.totalorder %s75, %s89
      %p91 = scmp.eq.s32.totalorder %s23, 0
      %p92 = por %p90, %p91
      %s94 = sadd.s32 %s93, 1
      %p97 = scmp.eq.s32.totalorder %s17, 1
      %p98 = scmp.ne.s32.totalorder %s93, %s95
      %p99 = scmp.eq.s32.totalorder %s17, 0
      %p100 = por %p98, %p99
      %p101 = scmp.ne.s32.totalorder %s93, %s95
      %p102 = scmp.eq.s32.totalorder %s22, 1
      %p103 = por %p101, %p102
      %p104 = scmp.ne.s32.totalorder %s95, %s96
      %p105 = scmp.eq.s32.totalorder %s22, 0
      %p106 = por %p104, %p105
      %p107 = scmp.ne.s32.totalorder %s95, %s96
      %p108 = scmp.eq.s32.totalorder %s23, 1
      %p109 = por %p107, %p108
      %p111 = scmp.ne.s32.totalorder %s96, %s110
      %p112 = scmp.eq.s32.totalorder %s23, 0
      %p113 = por %p111, %p112
      %s115 = sadd.s32 %s114, 1
      %p118 = scmp.eq.s32.totalorder %s17, 1
      %p119 = scmp.ne.s32.totalorder %s114, %s116
      %p120 = scmp.eq.s32.totalorder %s17, 0
      %p121 = por %p119, %p120
      %p122 = scmp.ne.s32.totalorder %s114, %s116
      %p123 = scmp.eq.s32.totalorder %s22, 1
      %p124 = por %p122, %p123
      %p125 = scmp.ne.s32.totalorder %s116, %s117
      %p126 = scmp.eq.s32.totalorder %s22, 0
      %p127 = por %p125, %p126
      %p128 = scmp.ne.s32.totalorder %s116, %s117
      %p129 = scmp.eq.s32.totalorder %s23, 1
      %p130 = por %p128, %p129
      %p132 = scmp.ne.s32.totalorder %s117, %s131
      %p133 = scmp.eq.s32.totalorder %s23, 0
      %p134 = por %p132, %p133
      %s136 = sadd.s32 %s135, 1
      %p139 = scmp.eq.s32.totalorder %s17, 1
      %p140 = scmp.ne.s32.totalorder %s135, %s137
      %p141 = scmp.eq.s32.totalorder %s17, 0
      %p142 = por %p140, %p141
      %p143 = scmp.ne.s32.totalorder %s135, %s137
      %p144 = scmp.eq.s32.totalorder %s22, 1
      %p145 = por %p143, %p144
      %p146 = scmp.ne.s32.totalorder %s137, %s138
      %p147 = scmp.eq.s32.totalorder %s22, 0
      %p148 = por %p146, %p147
      %p149 = scmp.ne.s32.totalorder %s137, %s138
      %p150 = scmp.eq.s32.totalorder %s23, 1
      %p151 = por %p149, %p150
      %p153 = scmp.ne.s32.totalorder %s138, %s152
      %p154 = scmp.eq.s32.totalorder %s23, 0
      %p155 = por %p153, %p154
      %s157 = sadd.s32 %s156, 1
      %p160 = scmp.eq.s32.totalorder %s17, 1
      %p161 = scmp.ne.s32.totalorder %s156, %s158
      %p162 = scmp.eq.s32.totalorder %s17, 0
      %p163 = por %p161, %p162
      %p164 = scmp.ne.s32.totalorder %s156, %s158
      %p165 = scmp.eq.s32.totalorder %s22, 1
      %p166 = por %p164, %p165
      %p167 = scmp.ne.s32.totalorder %s158, %s159
      %p168 = scmp.eq.s32.totalorder %s22, 0
      %p169 = por %p167, %p168
      %p170 = scmp.ne.s32.totalorder %s158, %s159
      %p171 = scmp.eq.s32.totalorder %s23, 1
      %p172 = por %p170, %p171
      %p174 = scmp.ne.s32.totalorder %s159, %s173
      %p175 = scmp.eq.s32.totalorder %s23, 0
      %p176 = por %p174, %p175
      %s178 = sadd.s32 %s177, 1
      %p181 = scmp.eq.s32.totalorder %s17, 1
      %p182 = scmp.ne.s32.totalorder %s177, %s179
      %p183 = scmp.eq.s32.totalorder %s17, 0
      %p184 = por %p182, %p183
      %p185 = scmp.ne.s32.totalorder %s177, %s179
      %p186 = scmp.eq.s32.totalorder %s22, 1
      %p187 = por %p185, %p186
      %p188 = scmp.ne.s32.totalorder %s179, %s180
      %p189 = scmp.eq.s32.totalorder %s22, 0
      %p190 = por %p188, %p189
      %p191 = scmp.ne.s32.totalorder %s179, %s180
      %p192 = scmp.eq.s32.totalorder %s23, 1
      %p193 = por %p191, %p192
      %p195 = scmp.ne.s32.totalorder %s180, %s194
      %p196 = scmp.eq.s32.totalorder %s23, 0
      %p197 = por %p195, %p196
      %s198 = ssub.s32 %s17, %s24
      %p199 = scmp.eq.s32.totalorder %s198, 0
      %s201 = sadd.s32 %s200, 1
      %s202 = scalar_select %p199, %s200, %s201
      %p205 = pneg %p199
      %p206 = scmp.eq.s32.totalorder %s17, 1
      %p207 = por %p205, %p206
      %p208 = scmp.ne.s32.totalorder %s200, %s203
      %p209 = scmp.eq.s32.totalorder %s17, 0
      %p210 = por %p208, %p209
      %p211 = scmp.ne.s32.totalorder %s200, %s203
      %p212 = scmp.eq.s32.totalorder %s22, 1
      %p213 = por %p211, %p212
      %p214 = scmp.ne.s32.totalorder %s203, %s204
      %p215 = scmp.eq.s32.totalorder %s22, 0
      %p216 = por %p214, %p215
      %p217 = scmp.ne.s32.totalorder %s203, %s204
      %p218 = scmp.eq.s32.totalorder %s23, 1
      %p219 = por %p217, %p218
      %p221 = scmp.ne.s32.totalorder %s204, %s220
      %p222 = scmp.eq.s32.totalorder %s23, 0
      %p223 = por %p221, %p222
      %p224 = scmp.le.s32.totalorder 1, %s17
      %p225 = scmp.lt.s32.totalorder %s17, 3
      %p226 = pnand %p224, %p225
      %p227 = pneg %p226
      // Predicated region
      $region9: #{tpu_custom_call.1} parent=5 // pred_check
        _
      $region10: #{tpu_custom_call.1} parent=5 // pred_check_branch
        %229 = sbr.rel (%p226) target = $region12
      $region11: #{tpu_custom_call.1} parent=5 // pred_region
        %s230 = ssub.s32 %s17, 1
        // Predicated region
        $region13: #{tpu_custom_call.1} parent=11 // pred_check
          %p231 = pneg %p64
        $region14: #{tpu_custom_call.1} parent=11 // pred_check_branch
          %233 = sbr.rel (%p231) target = $region16
        $region15: #{tpu_custom_call.1} parent=11 // pred_region
          _
        $region16: #{tpu_custom_call.1} parent=11 // pred_fallthru
          _
        // Predicated region
        $region17: #{tpu_custom_call.1} parent=11 // pred_check
          %p234 = pneg %p85
        $region18: #{tpu_custom_call.1} parent=11 // pred_check_branch
          %236 = sbr.rel (%p234) target = $region20
        $region19: #{tpu_custom_call.1} parent=11 // pred_region
          _
        $region20: #{tpu_custom_call.1} parent=11 // pred_fallthru
          _
        // Predicated region
        $region21: #{tpu_custom_call.1} parent=11 // pred_check
          %p237 = pneg %p106
        $region22: #{tpu_custom_call.1} parent=11 // pred_check_branch
          %239 = sbr.rel (%p237) target = $region24
        $region23: #{tpu_custom_call.1} parent=11 // pred_region
          _
        $region24: #{tpu_custom_call.1} parent=11 // pred_fallthru
          _
        // Predicated region
        $region25: #{tpu_custom_call.1} parent=11 // pred_check
          %p240 = pneg %p127
        $region26: #{tpu_custom_call.1} parent=11 // pred_check_branch
          %242 = sbr.rel (%p240) target = $region28
        $region27: #{tpu_custom_call.1} parent=11 // pred_region
          _
        $region28: #{tpu_custom_call.1} parent=11 // pred_fallthru
          _
        // Predicated region
        $region29: #{tpu_custom_call.1} parent=11 // pred_check
          %p243 = pneg %p148
        $region30: #{tpu_custom_call.1} parent=11 // pred_check_branch
          %245 = sbr.rel (%p243) target = $region32
        $region31: #{tpu_custom_call.1} parent=11 // pred_region
          _
        $region32: #{tpu_custom_call.1} parent=11 // pred_fallthru
          _
        // Predicated region
        $region33: #{tpu_custom_call.1} parent=11 // pred_check
          %p246 = pneg %p169
        $region34: #{tpu_custom_call.1} parent=11 // pred_check_branch
          %248 = sbr.rel (%p246) target = $region36
        $region35: #{tpu_custom_call.1} parent=11 // pred_region
          _
        $region36: #{tpu_custom_call.1} parent=11 // pred_fallthru
          _
        // Predicated region
        $region37: #{tpu_custom_call.1} parent=11 // pred_check
          %p249 = pneg %p190
        $region38: #{tpu_custom_call.1} parent=11 // pred_check_branch
          %251 = sbr.rel (%p249) target = $region40
        $region39: #{tpu_custom_call.1} parent=11 // pred_region
          _
        $region40: #{tpu_custom_call.1} parent=11 // pred_fallthru
          _
      $region12: #{tpu_custom_call.1} parent=5 // pred_fallthru
        _
      %p252 = scmp.lt.s32.totalorder %s17, 2
      // Predicated region
      $region41: #{tpu_custom_call.1} parent=5 // pred_check
        %p253 = pneg %p252
      $region42: #{tpu_custom_call.1} parent=5 // pred_check_branch
        %255 = sbr.rel (%p253) target = $region44
      $region43: #{tpu_custom_call.1} parent=5 // pred_region
        // Predicated region
        $region45: #{tpu_custom_call.1} parent=43 // pred_check
          %p256 = pneg %p37
        $region46: #{tpu_custom_call.1} parent=43 // pred_check_branch
          %258 = sbr.rel (%p256) target = $region48
        $region47: #{tpu_custom_call.1} parent=43 // pred_region
          %p259 = scmp.lt.s32.totalorder %s17, 1
          %s260 = scalar_select %p259, %s17, 1
          %s261 = smul.addr %s260, 2
          %s262 = smul.addr %s261, 4
          %s263 = scalar_lea.vmem %s0, %s262
        $region48: #{tpu_custom_call.1} parent=43 // pred_fallthru
          _
      $region44: #{tpu_custom_call.1} parent=5 // pred_fallthru
        _
      %p264 = scmp.le.s32.totalorder 1, %s17
      %p265 = scmp.lt.s32.totalorder %s17, 3
      %p266 = pnand %p264, %p265
      %p267 = pneg %p266
      // Predicated region
      $region49: #{tpu_custom_call.1} parent=5 // pred_check
        _
      $region50: #{tpu_custom_call.1} parent=5 // pred_check_branch
        %269 = sbr.rel (%p266) target = $region52
      $region51: #{tpu_custom_call.1} parent=5 // pred_region
        %s270 = ssub.s32 %s17, 1
        %p271 = scmp.lt.s32.totalorder %s22, 1
        %s272 = scalar_select %p271, %s22, 1
        %s273 = smul.addr %s272, 2
        %s274 = smul.addr %s273, 4
        %s275 = scalar_lea.vmem %s0, %s274
        %p276 = pneg %p43
        %p277 = pneg %p40
        %p278 = pneg %p64
        %p279 = pneg %p61
        %p280 = pneg %p85
        %p281 = pneg %p82
        %p282 = pneg %p106
        %p283 = pneg %p103
        %p284 = pneg %p127
        %p285 = pneg %p124
        %p286 = pneg %p148
        %p287 = pneg %p145
        %p288 = pneg %p169
        %p289 = pneg %p166
        %p290 = pneg %p190
        %p291 = pneg %p187
        %p292 = pneg %p216
        %p293 = pneg %p213
        %s294 = sand.u32 %s203, 1
        %s295 = scalar_lea.sflag [#allocation3], %s294
        %s296 = sand.u32 %s203, 1
        %s297 = smul.addr %s296, 8
        %s298 = scalar_lea.vmem [#allocation2], %s297
        %p299 = scmp.lt.s32.totalorder %s22, 1
        %s300 = scalar_select %p299, %s22, 1
        %s301 = smul.addr %s300, 2
        %s302 = smul.addr %s301, 4
        %s303 = scalar_lea.vmem %s0, %s302
        %v304 = vld [vmem:[%s303] sm:$0xff]
        %v305 = vld [vmem:[%s1] sm:$0xff]
        %v306 = vld [vmem:[%s1 + $0x8] sm:$0xff]
        %v307 = vld [vmem:[%s1 + $0x10] sm:$0xff]
        %v308 = vld [vmem:[%s1 + $0x18] sm:$0xff]
        %v309 = vld [vmem:[%s1 + $0x20] sm:$0xff]
        %v310 = vld [vmem:[%s1 + $0x28] sm:$0xff]
        %v311 = vld [vmem:[%s1 + $0x30] sm:$0xff]
        %v312 = vld [vmem:[%s1 + $0x38] sm:$0xff]
        %v313 = vld [vmem:[%s1 + $0x40] sm:$0xff]
        %v314 = vld [vmem:[%s1 + $0x48] sm:$0xff]
        %v315 = vld [vmem:[%s1 + $0x50] sm:$0xff]
        %v316 = vld [vmem:[%s1 + $0x58] sm:$0xff]
        %v317 = vld [vmem:[%s1 + $0x60] sm:$0xff]
        %v318 = vld [vmem:[%s1 + $0x68] sm:$0xff]
        %v319 = vld [vmem:[%s1 + $0x70] sm:$0xff]
        %v320 = vld [vmem:[%s1 + $0x78] sm:$0xff]
        %v321 = vld [vmem:[%s1 + $0x80] sm:$0xff]
        %v322 = vld [vmem:[%s1 + $0x88] sm:$0xff]
        %v323 = vld [vmem:[%s1 + $0x90] sm:$0xff]
        %v324 = vld [vmem:[%s1 + $0x98] sm:$0xff]
        %v325 = vld [vmem:[%s1 + $0xa0] sm:$0xff]
        %v326 = vld [vmem:[%s1 + $0xa8] sm:$0xff]
        %v327 = vld [vmem:[%s1 + $0xb0] sm:$0xff]
        %v328 = vld [vmem:[%s1 + $0xb8] sm:$0xff]
        %v329 = vld [vmem:[%s1 + $0xc0] sm:$0xff]
        %v330 = vld [vmem:[%s1 + $0xc8] sm:$0xff]
        %v331 = vld [vmem:[%s1 + $0xd0] sm:$0xff]
        %v332 = vld [vmem:[%s1 + $0xd8] sm:$0xff]
        %v333 = vld [vmem:[%s1 + $0xe0] sm:$0xff]
        %v334 = vld [vmem:[%s1 + $0xe8] sm:$0xff]
        %v335 = vld [vmem:[%s1 + $0xf0] sm:$0xff]
        %v336 = vld [vmem:[%s1 + $0xf8] sm:$0xff]
        %338 = vst [vmem:[#allocation1] ss:$2 sm:$0xff] %v304
        %v339 = vld.sshfl [vmem:[#allocation1] sm:$0xff pattern:$0x75316420]
        %v340 = vld.sshfl [vmem:[#allocation1 + $0x8] sm:$0xff pattern:$0x75316420]
        %343 = vmatpush.msra.mxu0 %v320
        %344 = vmatpush.msra.mxu0 %v319
        %345 = vmatpush.msra.mxu0 %v318
        %346 = vmatpush.msra.mxu0 %v317
        %347 = vmatpush.msra.mxu0 %v316
        %348 = vmatpush.msra.mxu0 %v315
        %349 = vmatpush.msra.mxu0 %v314
        %350 = vmatpush.msra.mxu0 %v313
        %351 = vmatpush.msra.mxu0 %v312
        %352 = vmatpush.msra.mxu0 %v311
        %353 = vmatpush.msra.mxu0 %v310
        %354 = vmatpush.msra.mxu0 %v309
        %355 = vmatpush.msra.mxu0 %v308
        %356 = vmatpush.msra.mxu0 %v307
        %357 = vmatpush.msra.mxu0 %v306
        %358 = vmatpush.msra.mxu0 %v305
        %359 = vmatmul.f32.gmra.mxu0 %v339
        %v360 = vpop.f32.mrf.mxu0
        %v361 = vadd.f32 0.0, %v360
        %362 = vdwg.mxu0
        %363 = vmatpush.msra.mxu0 %v336
        %364 = vmatpush.msra.mxu0 %v335
        %365 = vmatpush.msra.mxu0 %v334
        %366 = vmatpush.msra.mxu0 %v333
        %367 = vmatpush.msra.mxu0 %v332
        %368 = vmatpush.msra.mxu0 %v331
        %369 = vmatpush.msra.mxu0 %v330
        %370 = vmatpush.msra.mxu0 %v329
        %371 = vmatpush.msra.mxu0 %v328
        %372 = vmatpush.msra.mxu0 %v327
        %373 = vmatpush.msra.mxu0 %v326
        %374 = vmatpush.msra.mxu0 %v325
        %375 = vmatpush.msra.mxu0 %v324
        %376 = vmatpush.msra.mxu0 %v323
        %377 = vmatpush.msra.mxu0 %v322
        %378 = vmatpush.msra.mxu0 %v321
        %379 = vmatmul.f32.gmra.mxu0 %v340
        %v380 = vpop.f32.mrf.mxu0
        %v381 = vadd.f32 %v361, %v380
        %382 = vdwg.mxu0
        %v383 = vld [vmem:[%s2] sm:$0xff]
        %v384 = vld [vmem:[%s2 + $0x8] sm:$0xff]
        %v385 = vld [vmem:[%s2 + $0x10] sm:$0xff]
        %v386 = vld [vmem:[%s2 + $0x18] sm:$0xff]
        %v387 = vld [vmem:[%s2 + $0x20] sm:$0xff]
        %v388 = vld [vmem:[%s2 + $0x28] sm:$0xff]
        %v389 = vld [vmem:[%s2 + $0x30] sm:$0xff]
        %v390 = vld [vmem:[%s2 + $0x38] sm:$0xff]
        %v391 = vld [vmem:[%s2 + $0x40] sm:$0xff]
        %v392 = vld [vmem:[%s2 + $0x48] sm:$0xff]
        %v393 = vld [vmem:[%s2 + $0x50] sm:$0x1f]
        %vm394 = vcmask 695296
        %v396 = vsel %vm394, %v381, 0
        %vm398 = vcmask 1044480
        %v400 = vsel %vm398, %v393, 0
        %402 = vmatpush.msra.mxu0 0.0
        %403 = vmatpush.msra.mxu0 0.0
        %404 = vmatpush.msra.mxu0 0.0
        %405 = vmatpush.msra.mxu0 0.0
        %406 = vmatpush.msra.mxu0 0.0
        %407 = vmatpush.msra.mxu0 %v400
        %408 = vmatpush.msra.mxu0 %v392
        %409 = vmatpush.msra.mxu0 %v391
        %410 = vmatpush.msra.mxu0 %v390
        %411 = vmatpush.msra.mxu0 %v389
        %412 = vmatpush.msra.mxu0 %v388
        %413 = vmatpush.msra.mxu0 %v387
        %414 = vmatpush.msra.mxu0 %v386
        %415 = vmatpush.msra.mxu0 %v385
        %416 = vmatpush.msra.mxu0 %v384
        %417 = vmatpush.msra.mxu0 %v383
        %418 = vmatmul.f32.gmra.mxu0 %v396
        %v419 = vpop.f32.mrf.mxu0
        %v420 = vadd.f32 0.0, %v419
        %421 = vdwg.mxu0
        %v422 = vld [vmem:[%s4] sm:$0xf]
        %v423 = vmul.f32 %v420, %v422
        %vm424 = vcmask 257024
        %v425 = vsel %vm424, %v423, 0.0
        %v426 = vrot.slane %v425, 4
        %v427 = vadd.f32 %v425, %v426
        %v428 = vrot.slane %v427, 2
        %v429 = vadd.f32 %v427, %v428
        %v430 = vrot.slane %v429, 1
        %v431 = vadd.f32 %v429, %v430
        %v432 = vld [vmem:[%s3] sm:$0x1]
        %v433 = vadd.f32 %v431, %v432
        %v434 = vld [vmem:[%s5] sm:$0xff]
        %v435 = vld [vmem:[%s5 + $0x8] sm:$0xff]
        %v436 = vld [vmem:[%s5 + $0x10] sm:$0xff]
        %v437 = vld [vmem:[%s5 + $0x18] sm:$0xff]
        %vm438 = vcmask 261120
        %v440 = vsel %vm438, %v433, 0
        %442 = vmatpush.msra.mxu0 0.0
        %443 = vmatpush.msra.mxu0 0.0
        %444 = vmatpush.msra.mxu0 0.0
        %445 = vmatpush.msra.mxu0 0.0
        %446 = vmatpush.msra.mxu0 0.0
        %447 = vmatpush.msra.mxu0 0.0
        %448 = vmatpush.msra.mxu0 0.0
        %449 = vmatpush.msra.mxu0 0.0
        %450 = vmatpush.msra.mxu0 0.0
        %451 = vmatpush.msra.mxu0 0.0
        %452 = vmatpush.msra.mxu0 0.0
        %453 = vmatpush.msra.mxu0 0.0
        %454 = vmatpush.msra.mxu0 %v437
        %455 = vmatpush.msra.mxu0 %v436
        %456 = vmatpush.msra.mxu0 %v435
        %457 = vmatpush.msra.mxu0 %v434
        %458 = vmatmul.f32.gmra.mxu0 %v440
        %v459 = vpop.f32.mrf.mxu0
        %v460 = vadd.f32 0.0, %v459
        %461 = vdwg.mxu0
        %v462 = vmax.f32 %v460, 0.0
        %v463 = vld [vmem:[%s6] sm:$0xff]
        %v464 = vld [vmem:[%s6 + $0x8] sm:$0xff]
        %v465 = vld [vmem:[%s7] sm:$0x1]
        %vm466 = vcmask 130048
        %v468 = vsel %vm466, %v462, 0
        %470 = vmatpush.msra.mxu0 0.0
        %471 = vmatpush.msra.mxu0 0.0
        %472 = vmatpush.msra.mxu0 0.0
        %473 = vmatpush.msra.mxu0 0.0
        %474 = vmatpush.msra.mxu0 0.0
        %475 = vmatpush.msra.mxu0 0.0
        %476 = vmatpush.msra.mxu0 0.0
        %477 = vmatpush.msra.mxu0 0.0
        %478 = vmatpush.msra.mxu0 0.0
        %479 = vmatpush.msra.mxu0 0.0
        %480 = vmatpush.msra.mxu0 0.0
        %481 = vmatpush.msra.mxu0 0.0
        %482 = vmatpush.msra.mxu0 0.0
        %483 = vmatpush.msra.mxu0 0.0
        %484 = vmatpush.msra.mxu0 %v464
        %485 = vmatpush.msra.mxu0 %v463
        %486 = vmatmul.f32.gmra.mxu0 %v468
        %v487 = vpop.f32.mrf.mxu0
        %v488 = vadd.f32 %v465, %v487
        %489 = vdwg.mxu0
        %v490 = vsub.f32 0.0, %v488
        %v491 = vmul.f32 %v490, 1.442695
        %v492 = vpow.pop %v491
        %v493 = vadd.f32 %v492, 1.0
        %v494 = vrcp.pop %v493
        %v495 = vmul.f32 %v493, %v494
        %v496 = vsub.f32 1.0, %v495
        %v497 = vmul.f32 %v494, %v496
        %v498 = vadd.f32 %v494, %v497
        %vm499 = vweird.f32 %v493
        %vm500 = vweird.f32 %v494
        %vm501 = vmor %vm499, %vm500
        %v502 = vsel %vm501, %v494, %v498
        %v503 = vand.u32 2147483647, %v493
        %vm504 = vcmp.eq.f32.partialorder %v503, 8.507059e+37
        %v505 = vand.u32 %v493, 2147483648
        %v506 = vor.u32 1.1754944e-38, %v505
        %v507 = vsel %vm504, %v506, %v502
        %v508 = vmul.f32 1.0, %v507
        %v509 = vlaneseq
        %v510 = vshrl.u32 %v509, 7
        %v511 = vlaneseq
        %v512 = vand.u32 %v511, 127
        %vm513 = vcmp.eq.s32.totalorder %v510, %v512
        %v514 = vsel %vm513, 1, 0
        %v515 = vcvt.s32.f32 %v514
        %v516 = vperm.slane %v508, 0
        %v517 = vmul.f32 %v515, %v516
        %vm518 = vcmask 27648
        %v519 = vsel %vm518, %v517, 0.0
        %520 = vadd.xlane.f32.xlu0 %v519
        %v521 = vpop.xlane.xlu0 %520
        %522 = vst [vmem:[#allocation1] ss:$2 sm:$0xff] %v304
        %v523 = vld.sshfl [vmem:[#allocation1] sm:$0xff pattern:$0x75316420]
        %v524 = vld.sshfl [vmem:[#allocation1 + $0x8] sm:$0xff pattern:$0x75316420]
        %v527 = vmul.f32 %v521, %v523
        %v528 = vmul.f32 %v521, %v524
        %v531 = vrot.slane %v528, 4
        %vm532 = vcmask 1043456
        %v533 = vsel %vm532, %v527, %v531
        %535 = vst [vmem:[%s298] sm:$0xff] %v533
        %s536 = sand.u32 %s203, 1
        %s537 = scalar_lea.sflag [#allocation3], %s536
        %s538 = sand.u32 %s203, 1
        %s539 = smul.addr %s538, 8
        %s540 = scalar_lea.vmem [#allocation2], %s539
        // Predicated region
        $region53: #{tpu_custom_call.1} parent=51 // pred_check
          %p541 = pneg %p213
        $region54: #{tpu_custom_call.1} parent=51 // pred_check_branch
          %543 = sbr.rel (%p541) target = $region56
        $region55: #{tpu_custom_call.1} parent=51 // pred_region
          %545 = vsyncadd %s537, 0
          %s546 = smul.addr %s22, 2
          %s547 = smul.addr %s546, 4
          %s548 = scalar_lea.hbm %s8, %s547
          %s550 = sshll.u32 %s540, 4
          %s551 = int_to_ptr.vmem [resolvable:$true] %s550
          %s552 = sshll.u32 %s548, 4
          %s553 = int_to_ptr.hbm [resolvable:$true] %s552
          %555 = dma.vmem_to_hbm [thread:$0]  %s551, 128, %s553, %s537
        $region56: #{tpu_custom_call.1} parent=51 // pred_fallthru
          _
      $region52: #{tpu_custom_call.1} parent=5 // pred_fallthru
        _
      %p556 = scmp.le.s32.totalorder 2, %s17
      // Predicated region
      $region57: #{tpu_custom_call.1} parent=5 // pred_check
        %p557 = pneg %p556
      $region58: #{tpu_custom_call.1} parent=5 // pred_check_branch
        %559 = sbr.rel (%p557) target = $region60
      $region59: #{tpu_custom_call.1} parent=5 // pred_region
        %s560 = ssub.s32 %s17, 2
        // Predicated region
        $region61: #{tpu_custom_call.1} parent=59 // pred_check
          %p561 = pneg %p219
        $region62: #{tpu_custom_call.1} parent=59 // pred_check_branch
          %563 = sbr.rel (%p561) target = $region64
        $region63: #{tpu_custom_call.1} parent=59 // pred_region
          %s564 = sand.u32 %s204, 1
          %s565 = scalar_lea.sflag [#allocation3], %s564
          %s566 = sand.u32 %s204, 1
          %s567 = smul.addr %s566, 8
          %s568 = scalar_lea.vmem [#allocation2], %s567
          %570 = dma.done %s565, 128
        $region64: #{tpu_custom_call.1} parent=59 // pred_fallthru
          _
      $region60: #{tpu_custom_call.1} parent=5 // pred_fallthru
        _
    $region6: #{tpu_custom_call.1} parent=1 // loop_footer
      %s21 = sadd.s32 1, %s17
    $region7: #{tpu_custom_call.1} parent=1 // loop_footer_branch
      %16 = sbr.rel target = $region3
    $region8: #{tpu_custom_call.1} parent=1 // loop_exit
      _
    %571 = vsyncpa [#allocation3], 1
    %s572 = scalar_lea.sflag [#allocation3], 1
    %573 = vsyncpa %s572, 1

</llo_original>
